<compile_context>
chip_gen: v5e
topology: v5e:2x2
jax: 0.10.0
libtpu: 0.0.40
codegen_flags: <defaults>
</compile_context>

<pallas_src>
import functools

import jax
import jax.numpy as jnp
from jax import lax
from jax.experimental import pallas as pl
from jax.experimental.pallas import tpu as pltpu

_SLOT = 128  # lane-aligned column-slot width inside the packed weight slab


# ----------------------------------------------------------------------------
# Pallas kernel: whole head for one batch tile, lane-dense (rows, L) layout
# ----------------------------------------------------------------------------
def _head_kernel(x0_ref, x1_ref, x2_ref, x3_ref, wpack_ref,
                 u1_ref, u2_ref, u3_ref, out_ref, *,
                 H, W, C0, cins, roll_like_jnp):
    L = x0_ref.shape[1]            # batch_tile * H * W   (lane axis)
    HW = H * W

    # ---- 1x1 convs at native resolution (bias folded via the ones row) ------
    def conv1x1(i, x_ref):
        wa = wpack_ref[:, i * _SLOT:i * _SLOT + cins[i] + 1]   # (C0, cin_i+1)
        return jnp.dot(wa, x_ref[...], preferred_element_type=jnp.float32)

    f0 = conv1x1(0, x0_ref)        # (C0, L)       level 0 is already full-res
    z1 = conv1x1(1, x1_ref)        # (C0, L/4)
    z2 = conv1x1(2, x2_ref)        # (C0, L/16)
    z3 = conv1x1(3, x3_ref)        # (C0, L/64)

    # ---- bilinear x2/x4/x8 upsample == matmul with precomputed interp matrix
    f1 = jnp.dot(z1, u1_ref[...], preferred_element_type=jnp.float32)  # (C0, L)
    f2 = jnp.dot(z2, u2_ref[...], preferred_element_type=jnp.float32)
    f3 = jnp.dot(z3, u3_ref[...], preferred_element_type=jnp.float32)

    s = f0 + f1 + f2 + f3          # (C0, L)

    # ---- 3x3 SAME conv: 9 taps via XLU rolls + in-kernel iota border masks --
    lane = lax.broadcasted_iota(jnp.int32, (C0, L), 1)
    if (W & (W - 1)) == 0 and (HW & (HW - 1)) == 0:   # power-of-two fast path
        xpos = lane & (W - 1)
        ypos = (lane & (HW - 1)) >> (W.bit_length() - 1)
    else:
        xpos = lane % W
        ypos = (lane % HW) // W
    not_top, not_bot = ypos != 0, ypos != (H - 1)
    not_left, not_right = xpos != 0, xpos != (W - 1)

    fin = None
    for ky in range(3):
        taps = []
        for kx in range(3):
            d = (ky - 1) * W + (kx - 1)          # want tap[p] = s[p + d]
            if d == 0:
                tap = s
            else:
                shift = ((-d) if roll_like_jnp else d) % L
                tap = pltpu.roll(s, shift, axis=1)
            # circular wrap (incl. across batch elements) is killed by masks
            if ky == 0:
                tap = jnp.where(not_top, tap, 0.0)
            elif ky == 2:
                tap = jnp.where(not_bot, tap, 0.0)
            if kx == 0:
                tap = jnp.where(not_left, tap, 0.0)
            elif kx == 2:
                tap = jnp.where(not_right, tap, 0.0)
            taps.append(tap)
        group = jnp.concatenate(taps, axis=0)                  # (3*C0, L)
        wk = wpack_ref[:, (4 + ky) * _SLOT:(4 + ky) * _SLOT + 3 * C0]
        part = jnp.dot(wk, group, preferred_element_type=jnp.float32)
        fin = part if fin is None else fin + part
    fin = fin + wpack_ref[:, 7 * _SLOT:7 * _SLOT + 1]          # 3x3 bias

    # ---- single merged lane-dense store: [fin | f0 | f1 | f2 | f3] ----------
    out_ref[...] = jnp.concatenate([fin, f0, f1, f2, f3], axis=0)


# ----------------------------------------------------------------------------
# One-time parameter preparation (hoisted out of the per-call path)
# ----------------------------------------------------------------------------
def _bilinear_1d_matrix(out_len, in_len):
    """(out_len, in_len) interp matrix matching torch Upsample(align_corners=False)."""
    if out_len == in_len:
        return jnp.eye(out_len, dtype=jnp.float32)
    scale = out_len / in_len
    dst = jnp.arange(out_len, dtype=jnp.float32)
    src = jnp.maximum((dst + 0.5) / scale - 0.5, 0.0)
    i0 = jnp.minimum(jnp.floor(src).astype(jnp.int32), in_len - 1)
    i1 = jnp.minimum(i0 + 1, in_len - 1)
    frac = src - i0.astype(jnp.float32)
    rows = jnp.arange(out_len)
    m = jnp.zeros((out_len, in_len), jnp.float32)
    m = m.at[rows, i0].add(1.0 - frac)
    m = m.at[rows, i1].add(frac)
    return m


def _pltpu_roll_matches_jnp_roll():
    """Tiny one-time self-check selecting the roll shift sign, so the tap math
    is robust to the hardware rotate direction convention."""
    x = jnp.arange(8 * 256, dtype=jnp.float32).reshape(8, 256)

    def k(x_ref, o_ref):
        o_ref[...] = pltpu.roll(x_ref[...], 3, axis=1)

    y = pl.pallas_call(k, out_shape=jax.ShapeDtypeStruct((8, 256), jnp.float32))(x)
    return bool(jnp.array_equal(y, jnp.roll(x, 3, axis=1)))


def prepare_head_params(params, fea_shapes):
    """Pack weights/biases into one 128-aligned slab and build the
    block-diagonal bilinear interpolation matrices (done once, not per call)."""
    n, _, H, W = (int(v) for v in fea_shapes[0])
    c0 = int(params["w0"].shape[1])
    cins = tuple(int(s[1]) for s in fea_shapes)
    assert all(ci + 1 <= _SLOT for ci in cins) and 3 * c0 <= _SLOT

    # packed weight slab: [Wa0|Wa1|Wa2|Wa3|wf_ky0|wf_ky1|wf_ky2|bf], one slot each
    wpack = jnp.zeros((c0, 8 * _SLOT), jnp.float32)
    for i in range(4):
        wa = jnp.concatenate(
            [params[f"w{i}"].T, params[f"b{i}"].reshape(c0, 1)], axis=1)
        wpack = wpack.at[:, i * _SLOT:i * _SLOT + cins[i] + 1].set(wa)
    wf = params["wf"]                        # (3, 3, cin=c0, cout=c0), HWIO
    for ky in range(3):
        wk = jnp.transpose(wf[ky], (2, 0, 1)).reshape(c0, 3 * c0)
        wpack = wpack.at[:, (4 + ky) * _SLOT:(4 + ky) * _SLOT + 3 * c0].set(wk)
    wpack = wpack.at[:, 7 * _SLOT:7 * _SLOT + 1].set(params["bf"].reshape(c0, 1))

    # per-level upsample matrices (Kronecker of 1-D bilinear weights),
    # block-diagonal over the batch because the batch lives in the lane axis.
    us = {}
    eye_n = jnp.eye(n, dtype=jnp.float32)
    for i in (1, 2, 3):
        hi, wi = int(fea_shapes[i][2]), int(fea_shapes[i][3])
        k2d = jnp.kron(_bilinear_1d_matrix(H, hi), _bilinear_1d_matrix(W, wi))
        us[f"u{i}"] = jnp.kron(eye_n, k2d.T)          # (n*hi*wi, n*H*W)

    return dict(wpack=wpack, c0=c0, cins=cins,
                roll_like_jnp=_pltpu_roll_matches_jnp_roll(), **us)


# ----------------------------------------------------------------------------
# Forward wrapper (inputs are PyTorch-style NCHW)
# ----------------------------------------------------------------------------
def head_forward(fea_list, prep):
    """fea_list: 4 NCHW feature maps (level 0 full-res, deeper levels smaller)."""
    n, _, H, W = fea_list[0].shape
    c0, cins = prep["c0"], prep["cins"]
    hw = H * W
    hws = [int(x.shape[2] * x.shape[3]) for x in fea_list]
    assert prep["u1"].shape == (n * hws[1], n * hw), "prep built for other shapes"

    def to_lanes(x):
        # (n, C, h, w) -> (C+1, n*h*w): batch folded into lanes + ones row so
        # the conv bias rides inside the matmul (no separate bias DMA).
        nn, cc, hh, ww = x.shape
        xf = jnp.transpose(x, (1, 0, 2, 3)).reshape(cc, nn * hh * ww)
        ones = jnp.ones((1, nn * hh * ww), jnp.float32)
        return jnp.concatenate([xf.astype(jnp.float32), ones], axis=0)

    xs = [to_lanes(x) for x in fea_list]

    kernel = functools.partial(_head_kernel, H=H, W=W, C0=c0, cins=cins,
                               roll_like_jnp=prep["roll_like_jnp"])

    # Whole batch in one grid step (review: per-step overhead >> compute here).
    # For large n one would tile the lane axis over a "parallel" grid instead.
    x_specs = [pl.BlockSpec((cins[i] + 1, n * hws[i]), lambda t: (0, t))
               for i in range(4)]
    const_specs = [pl.BlockSpec(prep[k].shape, lambda t: (0, 0))
                   for k in ("wpack", "u1", "u2", "u3")]

    out = pl.pallas_call(
        kernel,
        out_shape=jax.ShapeDtypeStruct((5 * c0, n * hw), jnp.float32),
        grid=(1,),
        in_specs=x_specs + const_specs,
        out_specs=pl.BlockSpec((5 * c0, n * hw), lambda t: (0, t)),
        compiler_params=pltpu.CompilerParams(
            dimension_semantics=("arbitrary",)),
    )(xs[0], xs[1], xs[2], xs[3],
      prep["wpack"], prep["u1"], prep["u2"], prep["u3"])

    def from_lanes(rows):
        return rows.reshape(c0, n, H, W).transpose(1, 0, 2, 3)

    fin = from_lanes(out[0:c0])
    feats = [from_lanes(out[(k + 1) * c0:(k + 2) * c0]) for k in range(4)]
    return fin, feats


# ----------------------------------------------------------------------------
# Pure-JAX reference (for the correctness check), NCHW
# ----------------------------------------------------------------------------
def bilinear_upsample_nchw(x, scale):
    n, c, h, w = x.shape
    ho, wo = h * scale, w * scale

    def src_index(out_len, in_len, s):
        src = (jnp.arange(out_len, dtype=jnp.float32) + 0.5) / s - 0.5
        src = jnp.maximum(src, 0.0)
        i0 = jnp.minimum(jnp.floor(src).astype(jnp.int32), in_len - 1)
        i1 = jnp.minimum(i0 + 1, in_len - 1)
        frac = src - i0.astype(jnp.float32)
        return i0, i1, frac

    y0, y1, fy = src_index(ho, h, float(scale))
    x0, x1, fx = src_index(wo, w, float(scale))
    fy = fy[None, None, :, None]
    fx = fx[None, None, None, :]
    row0 = x[:, :, y0, :]
    row1 = x[:, :, y1, :]
    top = row0[:, :, :, x0] * (1.0 - fx) + row0[:, :, :, x1] * fx
    bot = row1[:, :, :, x0] * (1.0 - fx) + row1[:, :, :, x1] * fx
    return top * (1.0 - fy) + bot * fy


def head_reference(fea_list, params):
    x0, x1, x2, x3 = fea_list
    x1u = bilinear_upsample_nchw(x1, 2)
    x2u = bilinear_upsample_nchw(x2, 4)
    x3u = bilinear_upsample_nchw(x3, 8)

    def conv1x1(x, wgt, b):
        return jnp.einsum("nchw,cd->ndhw", x, wgt) + b[0][None, :, None, None]

    f0 = conv1x1(x0, params["w0"], params["b0"])
    f1 = conv1x1(x1u, params["w1"], params["b1"])
    f2 = conv1x1(x2u, params["w2"], params["b2"])
    f3 = conv1x1(x3u, params["w3"], params["b3"])
    s = f0 + f1 + f2 + f3
    fin = lax.conv_general_dilated(
        s, params["wf"], window_strides=(1, 1), padding="SAME",
        dimension_numbers=("NCHW", "HWIO", "NCHW"))
    fin = fin + params["bf"][0][None, :, None, None]
    return fin, [f0, f1, f2, f3]


# ----------------------------------------------------------------------------
if __name__ == "__main__":
    f_c = [8, 16, 32, 64]          # channels per pyramid level
    N = 2
    spatial = [16, 8, 4, 2]        # level-0 = 16x16, halved per level

    key = jax.random.PRNGKey(0)
    keys = jax.random.split(key, 16)

    # NOTE: weights stored as (cin, cout) and the 3x3 as (ky, kx, cin, cout)
    # (HWIO).  A real PyTorch state_dict ((cout,cin,1,1)/(cout,cin,3,3)) must
    # be transposed into this layout before prepare_head_params().
    params = {
        "w0": jax.random.normal(keys[0], (f_c[0], f_c[0]), jnp.float32) * 0.1,
        "b0": jax.random.normal(keys[1], (1, f_c[0]), jnp.float32) * 0.01,
        "w1": jax.random.normal(keys[2], (f_c[1], f_c[0]), jnp.float32) * 0.1,
        "b1": jax.random.normal(keys[3], (1, f_c[0]), jnp.float32) * 0.01,
        "w2": jax.random.normal(keys[4], (f_c[2], f_c[0]), jnp.float32) * 0.1,
        "b2": jax.random.normal(keys[5], (1, f_c[0]), jnp.float32) * 0.01,
        "w3": jax.random.normal(keys[6], (f_c[3], f_c[0]), jnp.float32) * 0.1,
        "b3": jax.random.normal(keys[7], (1, f_c[0]), jnp.float32) * 0.01,
        "wf": jax.random.normal(keys[8], (3, 3, f_c[0], f_c[0]),
                                jnp.float32) * 0.05,
        "bf": jax.random.normal(keys[9], (1, f_c[0]), jnp.float32) * 0.01,
    }

    # PyTorch-style NCHW pyramid inputs
    fea_nchw = [
        jax.random.normal(keys[10 + i], (N, f_c[i], spatial[i], spatial[i]),
                          jnp.float32)
        for i in range(4)
    ]

    prep = prepare_head_params(params, [x.shape for x in fea_nchw])  # one-time
    fwd = jax.jit(functools.partial(head_forward, prep=prep))

    fin, feats = fwd(fea_nchw)
    jax.block_until_ready((fin, feats))

    # correctness check against a pure-JAX reference
    fin_ref, feats_ref = head_reference(fea_nchw, params)
    assert jnp.allclose(fin, fin_ref, atol=2e-4, rtol=2e-4), "fin mismatch"
    for a, b in zip(feats, feats_ref):
        assert jnp.allclose(a, b, atol=2e-4, rtol=2e-4), "f_i mismatch"

    print("KERNEL_OK")
</pallas_src>

<mosaic_0001>
module attributes {stable_mosaic.version = 11 : i64} {
  func.func @k(%arg0: memref<8x256xf32, #tpu.memory_space<vmem>>, %arg1: memref<8x256xf32, #tpu.memory_space<vmem>>) attributes {dimension_semantics = [], scalar_prefetch = 0 : i64, scratch_operands = 0 : i64, tpu.core_type = #tpu.core_type<tc>} {
    %c0 = arith.constant 0 : index
    %c0_0 = arith.constant 0 : index
    %0 = vector.load %arg0[%c0, %c0_0] : memref<8x256xf32, #tpu.memory_space<vmem>>, vector<8x256xf32>
    %c3_i32 = arith.constant 3 : i32
    %1 = tpu.dynamic_rotate %0 by %c3_i32 dim 1 : vector<8x256xf32>, i32 -> vector<8x256xf32>
    %c0_1 = arith.constant 0 : index
    %c0_2 = arith.constant 0 : index
    %2 = vector.load %arg1[%c0_1, %c0_2] : memref<8x256xf32, #tpu.memory_space<vmem>>, vector<8x256xf32>
    tpu.vector_store %arg1[%c0_1, %c0_2], %1 {strides = array<i32>} : memref<8x256xf32, #tpu.memory_space<vmem>>, vector<8x256xf32>,
    return
  }
}

</mosaic_0001>

<llo_original>
// kernel: tpu_custom_call.1
$region0: #{tpu_custom_call.1}
  #allocation0 [shape = 'u32[]', space=smem, size = 0x4, offset = 0x4, fixed_abs, tag = 'smem constant byte address 0x4 - core index']
  #allocation1 [shape = 'u32[72,128]{1,0:T(1,128)}', space=vmem, size = 0x9000, scoped, tag = 'internal scratch']
  %s0 = inlined_call_operand.hbm [shape: f32[8,256], index: 0, kind: input, shape index: {}]
  %s1 = inlined_call_operand.hbm [shape: f32[8,256], index: 1, kind: output, shape index: {}]
  %s2 = sld [smem:[#allocation0]]
  $region18: #{tpu_custom_call.1} parent=0
    _
  %s4 = ssub.s32 1, %s2
  %s5 = scalar_select 0, %s4, %s2
  $region1: #{tpu_custom_call.1} parent=0
    #allocation2 [shape = 'u8[8192]{0}', space=vmem, size = 0x2000, scoped, tag = 'input window, operand 0, single buffered']
    #allocation3 [shape = 's32[1]{0}', space=sflag, size = 0x4, scoped, tag = 'scoped memory for tpu_custom_call.1']
    #allocation4 [shape = 's32[1]{0}', space=sflag, size = 0x4, scoped, tag = 'scoped memory for tpu_custom_call.1']
    #allocation5 [shape = 'u8[8192]{0}', space=vmem, size = 0x2000, scoped, tag = 'output window, operand 0, single buffered']
    %6 = vsyncpa [#allocation3], 0
    %7 = vsyncpa [#allocation4], 0
    // Predicated region
    $region2: #{tpu_custom_call.1} parent=1 // pred_check
      _
    $region3: #{tpu_custom_call.1} parent=1 // pred_check_branch
      %9 = sbr.rel (0) target = $region5
    $region4: #{tpu_custom_call.1} parent=1 // pred_region
      %11 = vsyncadd [#allocation3], 0
      %s13 = sshll.u32 %s0, 4
      %s14 = int_to_ptr.hbm [resolvable:$true] %s13
      %s15 = sshll.u32 [#allocation2], 4
      %s16 = int_to_ptr.vmem [resolvable:$true] %s15
      %18 = dma.hbm_to_vmem [thread:$0]  %s14, 256, %s16, [#allocation3]
    $region5: #{tpu_custom_call.1} parent=1 // pred_fallthru
      _
    // Predicated region
    $region6: #{tpu_custom_call.1} parent=1 // pred_check
      _
    $region7: #{tpu_custom_call.1} parent=1 // pred_check_branch
      %20 = sbr.rel (0) target = $region9
    $region8: #{tpu_custom_call.1} parent=1 // pred_region
      %22 = dma.done [#allocation3], 256
    $region9: #{tpu_custom_call.1} parent=1 // pred_fallthru
      _
    %v23 = vld [vmem:[#allocation2] sm:$0xff]
    %v24 = vld [vmem:[#allocation2 + $0x8] sm:$0xff]
    %25 = vrot.lane.b32.xlu0 %v23, 3
    %v26 = vpop.permute.xlu0 %25
    %27 = vrot.lane.b32.xlu0 %v24, 3
    %v28 = vpop.permute.xlu0 %27
    %v29 = vlaneseq
    %v30 = vand.u32 %v29, 127
    %vm31 = vcmp.lt.s32.totalorder %v30, 3
    %v32 = vsel %vm31, %v26, %v28
    %v33 = vsel %vm31, %v28, %v26
    %34 = vst [vmem:[#allocation5] sm:$0xff] %v33
    %35 = vst [vmem:[#allocation5 + $0x8] sm:$0xff] %v32
    // Predicated region
    $region10: #{tpu_custom_call.1} parent=1 // pred_check
      _
    $region11: #{tpu_custom_call.1} parent=1 // pred_check_branch
      %37 = sbr.rel (0) target = $region13
    $region12: #{tpu_custom_call.1} parent=1 // pred_region
      %39 = vsyncadd [#allocation4], 0
      %s41 = sshll.u32 [#allocation5], 4
      %s42 = int_to_ptr.vmem [resolvable:$true] %s41
      %s43 = sshll.u32 %s1, 4
      %s44 = int_to_ptr.hbm [resolvable:$true] %s43
      %46 = dma.vmem_to_hbm [thread:$0]  %s42, 256, %s44, [#allocation4]
    $region13: #{tpu_custom_call.1} parent=1 // pred_fallthru
      _
    // Predicated region
    $region14: #{tpu_custom_call.1} parent=1 // pred_check
      _
    $region15: #{tpu_custom_call.1} parent=1 // pred_check_branch
      %48 = sbr.rel (0) target = $region17
    $region16: #{tpu_custom_call.1} parent=1 // pred_region
      %50 = dma.done [#allocation4], 256
    $region17: #{tpu_custom_call.1} parent=1 // pred_fallthru
      _
    %51 = vsyncpa [#allocation3], 1
    %52 = vsyncpa [#allocation4], 1

</llo_original>
